<compile_context>
chip_gen: v6e
topology: v6e:2x2x1
jax: 0.10.0
libtpu: 0.0.40
codegen_flags: <defaults>
</compile_context>

<pallas_src>
import functools
import numpy as np

import jax
import jax.numpy as jnp
from jax.experimental import pallas as pl
from jax.experimental.pallas import tpu as pltpu


# Set to jnp.bfloat16 to feed the MXU in bf16 (f32 accumulation is kept) on
# v6e/v7x; default None keeps exact f32 semantics of the reference module.
_MM_DTYPE = None


def _c(x):
    return x if _MM_DTYPE is None else x.astype(_MM_DTYPE)


def _mm(a, b):
    return jnp.dot(_c(a), _c(b), preferred_element_type=jnp.float32)


# ----------------------------- Pallas kernels -----------------------------

def _ln_kernel(x_ref, g_ref, b_ref, o_ref):
    x = x_ref[...].astype(jnp.float32)
    mean = jnp.mean(x, axis=-1, keepdims=True)
    var = jnp.mean(jnp.square(x - mean), axis=-1, keepdims=True)
    y = (x - mean) * jax.lax.rsqrt(var + 1e-5)
    o_ref[...] = (y * g_ref[...].astype(jnp.float32)
                  + b_ref[...].astype(jnp.float32)).astype(o_ref.dtype)


def _linear_kernel(x_ref, w_ref, b_ref, o_ref):
    acc = _mm(x_ref[...].astype(jnp.float32), w_ref[...])
    o_ref[...] = (acc + b_ref[...].astype(jnp.float32)).astype(o_ref.dtype)


def _ln_linear_kernel(x_ref, g_ref, b_ref, w_ref, wb_ref, o_ref):
    x = x_ref[...].astype(jnp.float32)
    mean = jnp.mean(x, axis=-1, keepdims=True)
    var = jnp.mean(jnp.square(x - mean), axis=-1, keepdims=True)
    y = (x - mean) * jax.lax.rsqrt(var + 1e-5)
    y = y * g_ref[...].astype(jnp.float32) + b_ref[...].astype(jnp.float32)
    acc = _mm(y, w_ref[...])
    o_ref[...] = (acc + wb_ref[...].astype(jnp.float32)).astype(o_ref.dtype)


def _res_ln_mlp_kernel(attn_ref, sc_ref, g_ref, b_ref,
                       w1_ref, b1_ref, w2_ref, b2_ref, o_ref):
    # x_out = shortcut + attn ;  out = x_out + fc2(gelu(fc1(LN(x_out))))
    x = sc_ref[...].astype(jnp.float32) + attn_ref[...].astype(jnp.float32)
    mean = jnp.mean(x, axis=-1, keepdims=True)
    var = jnp.mean(jnp.square(x - mean), axis=-1, keepdims=True)
    y = (x - mean) * jax.lax.rsqrt(var + 1e-5)
    y = y * g_ref[...].astype(jnp.float32) + b_ref[...].astype(jnp.float32)
    h = _mm(y, w1_ref[...]) + b1_ref[...].astype(jnp.float32)
    h = jax.nn.gelu(h, approximate=False)     # exact GELU (torch nn.GELU default)
    m = _mm(h, w2_ref[...]) + b2_ref[...].astype(jnp.float32)
    o_ref[...] = (x + m).astype(o_ref.dtype)


def _window_attn_kernel(*refs, scale, num_heads, head_dim, has_mask):
    if has_mask:
        q_ref, k_ref, v_ref, bias_ref, mask_ref, pw_ref, pb_ref, o_ref = refs
    else:
        q_ref, k_ref, v_ref, bias_ref, pw_ref, pb_ref, o_ref = refs
        mask_ref = None

    q = q_ref[...].astype(jnp.float32) * scale        # (WB, N, C)
    k = k_ref[...].astype(jnp.float32)
    v = v_ref[...].astype(jnp.float32)
    bias = bias_ref[...].astype(jnp.float32)          # (Hh, N, N)
    mask = mask_ref[...].astype(jnp.float32) if has_mask else None   # (WB, N, N)

    heads = []
    for h in range(num_heads):
        lo = h * head_dim
        qh = q[:, :, lo:lo + head_dim]
        kh = k[:, :, lo:lo + head_dim]
        vh = v[:, :, lo:lo + head_dim]
        s = jnp.einsum('wnd,wmd->wnm', _c(qh), _c(kh),
                       preferred_element_type=jnp.float32)
        s = s + bias[h:h + 1]
        if has_mask:
            s = s + mask
        s = s - jnp.max(s, axis=-1, keepdims=True)
        e = jnp.exp(s)
        p = e * pl.reciprocal(jnp.sum(e, axis=-1, keepdims=True), approx=True)
        heads.append(jnp.einsum('wnm,wmd->wnd', _c(p), _c(vh),
                                preferred_element_type=jnp.float32))
    o = jnp.concatenate(heads, axis=-1)               # (WB, N, C)
    # fused output projection
    o = jnp.einsum('wnc,cd->wnd', _c(o), _c(pw_ref[...]),
                   preferred_element_type=jnp.float32)
    o = o + pb_ref[...].astype(jnp.float32)
    o_ref[...] = o.astype(o_ref.dtype)


# --------------------------- row-tiled wrappers ---------------------------

def _round_up(n, m):
    return ((n + m - 1) // m) * m


def _pick_row_tile(R, per_row_f32_elems, budget_bytes=12 << 20, cap=512):
    # keep ~double-buffered activation tiles well inside the VMEM scoped limit
    max_rows = max(8, budget_bytes // max(1, 4 * per_row_f32_elems))
    tile = min(cap, max_rows, _round_up(R, 8))
    tile = max(8, (tile // 8) * 8)
    return tile


def _rowwise_call(kernel, row_inputs, const_inputs, out_cols, out_dtype,
                  per_row_elems):
    R = row_inputs[0].shape[0]
    tile = _pick_row_tile(R, per_row_elems)
    Rp = _round_up(R, tile)
    if Rp != R:
        row_inputs = [jnp.pad(a, ((0, Rp - R), (0, 0))) for a in row_inputs]
    in_specs = [pl.BlockSpec((tile, a.shape[1]), lambda i: (i, 0))
                for a in row_inputs]
    in_specs += [pl.BlockSpec(c.shape, lambda i, nd=c.ndim: (0,) * nd)
                 for c in const_inputs]
    out = pl.pallas_call(
        kernel,
        out_shape=jax.ShapeDtypeStruct((Rp, out_cols), out_dtype),
        grid=(Rp // tile,),
        in_specs=in_specs,
        out_specs=pl.BlockSpec((tile, out_cols), lambda i: (i, 0)),
        compiler_params=pltpu.CompilerParams(
            dimension_semantics=("parallel",)),
    )(*row_inputs, *const_inputs)
    return out[:R] if Rp != R else out


def layernorm_rows(x, g, b):
    C = x.shape[1]
    return _rowwise_call(_ln_kernel, [x],
                         [g.reshape(1, C), b.reshape(1, C)],
                         C, x.dtype, per_row_elems=2 * C)


def linear_rows(x, w, b):
    Cin, Cout = x.shape[1], w.shape[1]
    return _rowwise_call(_linear_kernel, [x],
                         [w, b.reshape(1, Cout)],
                         Cout, x.dtype, per_row_elems=Cin + Cout)


def ln_linear_rows(x, g, gb, w, b):
    Cin, Cout = x.shape[1], w.shape[1]
    return _rowwise_call(_ln_linear_kernel, [x],
                         [g.reshape(1, Cin), gb.reshape(1, Cin),
                          w, b.reshape(1, Cout)],
                         Cout, x.dtype, per_row_elems=2 * Cin + Cout)


def res_ln_mlp_rows(attn, shortcut, g, b, w1, b1, w2, b2):
    C, Hd = attn.shape[1], w1.shape[1]
    return _rowwise_call(_res_ln_mlp_kernel, [attn, shortcut],
                         [g.reshape(1, C), b.reshape(1, C),
                          w1, b1.reshape(1, Hd), w2, b2.reshape(1, C)],
                         C, attn.dtype, per_row_elems=3 * C + Hd)


# ------------------------ window attention wrapper ------------------------

def _pick_window_batch(n_align, N, C, budget_bytes=8 << 20, cap=32):
    # rough per-window f32 footprint: q/k/v/out tiles + score/prob tiles
    per_w = 4 * (N * 4 * C + 3 * N * N)
    max_wb = max(1, budget_bytes // per_w)
    best = 1
    for d in range(1, n_align + 1):
        if n_align % d == 0 and d <= min(cap, max_wb):
            best = d
    return best


def window_attention_proj(q, k, v, rel_bias, mask, proj_w, proj_b, scale):
    # q, k, v: (nW, N, C);  rel_bias: (Hh, N, N);  mask: (nW_img, N, N) | None
    nW, N, C = q.shape
    Hh = rel_bias.shape[0]
    hd = C // Hh
    has_mask = mask is not None
    align = mask.shape[0] if has_mask else nW   # WB must divide nW_img (and nW)
    WB = _pick_window_batch(align, N, C)

    qkv_spec = pl.BlockSpec((WB, N, C), lambda w: (w, 0, 0))
    in_specs = [qkv_spec, qkv_spec, qkv_spec,
                pl.BlockSpec((Hh, N, N), lambda w: (0, 0, 0))]
    args = [q, k, v, jnp.asarray(rel_bias, jnp.float32)]
    if has_mask:
        nblk = align // WB
        in_specs.append(pl.BlockSpec((WB, N, N), lambda w: (w % nblk, 0, 0)))
        args.append(jnp.asarray(mask, jnp.float32))
    in_specs += [pl.BlockSpec((C, C), lambda w: (0, 0)),
                 pl.BlockSpec((1, C), lambda w: (0, 0))]
    args += [proj_w, proj_b.reshape(1, C)]

    kern = functools.partial(_window_attn_kernel, scale=scale,
                             num_heads=Hh, head_dim=hd, has_mask=has_mask)
    return pl.pallas_call(
        kern,
        out_shape=jax.ShapeDtypeStruct((nW, N, C), q.dtype),
        grid=(nW // WB,),
        in_specs=in_specs,
        out_specs=pl.BlockSpec((WB, N, C), lambda w: (w, 0, 0)),
        compiler_params=pltpu.CompilerParams(
            dimension_semantics=("parallel",)),
    )(*args)


# ------------------------------- glue (JAX) -------------------------------

def window_partition_jax(x, ws):
    B, S, H, W, C = x.shape
    x = x.reshape(B, S // ws, ws, H // ws, ws, W // ws, ws, C)
    return jnp.transpose(x, (0, 1, 3, 5, 2, 4, 6, 7)).reshape(-1, ws, ws, ws, C)


def window_reverse_jax(windows, ws, S, H, W):
    B = windows.shape[0] // (S * H * W // ws // ws // ws)
    x = windows.reshape(B, S // ws, H // ws, W // ws, ws, ws, ws, -1)
    return jnp.transpose(x, (0, 1, 4, 2, 5, 3, 6, 7)).reshape(B, S, H, W, -1)


def compute_relative_position_index(ws):
    # Faithful replication of WindowAttention_kv.__init__ buffer math.
    coords = np.stack(np.meshgrid(np.arange(ws), np.arange(ws), np.arange(ws),
                                  indexing="ij"))
    coords_flatten = coords.reshape(3, -1)
    relative_coords = coords_flatten[:, :, None] - coords_flatten[:, None, :]
    relative_coords = relative_coords.transpose(1, 2, 0).copy()
    relative_coords[:, :, 0] += ws - 1
    relative_coords[:, :, 1] += ws - 1
    relative_coords[:, :, 2] += ws - 1
    relative_coords[:, :, 0] *= 3 * ws - 1
    relative_coords[:, :, 1] *= 2 * ws - 1
    return relative_coords.sum(-1)  # (N, N) int


def swin_block_kv_forward(params, x, mask_matrix, skip, x_up, *,
                          input_resolution, num_heads, window_size,
                          shift_size):
    B, L, C = x.shape
    S, H, W = input_resolution
    assert L == S * H * W, "input feature has wrong size"

    ws = window_size
    if min(input_resolution) <= ws:
        shift_size = 0
        ws = min(input_resolution)
    assert 0 <= shift_size < ws

    head_dim = C // num_heads
    scale = head_dim ** -0.5
    N = ws * ws * ws

    pad_r = (ws - W % ws) % ws
    pad_b = (ws - H % ws) % ws
    pad_g = (ws - S % ws) % ws
    needs_pad = (pad_r > 0) or (pad_b > 0) or (pad_g > 0)

    shortcut2d = x.reshape(B * L, C)
    skip2d = skip.reshape(B * L, C)
    xup2d = x_up.reshape(B * L, C)

    if not needs_pad:
        # Fused norm1 + kv projection (valid: no padded tokens exist, and the
        # window partition / roll are pure row permutations).
        kv2d = ln_linear_rows(skip2d, params["norm1_g"], params["norm1_b"],
                              params["kv_w"], params["kv_b"])       # (B*L, 2C)
        q2d = layernorm_rows(xup2d, params["norm1_g"], params["norm1_b"])
        kv5 = kv2d.reshape(B, S, H, W, 2 * C)
        q5 = q2d.reshape(B, S, H, W, C)
        Sp, Hp, Wp = S, H, W
        if shift_size > 0:
            kv5 = jnp.roll(kv5, shift=(-shift_size,) * 3, axis=(1, 2, 3))
            q5 = jnp.roll(q5, shift=(-shift_size,) * 3, axis=(1, 2, 3))
            attn_mask = mask_matrix
        else:
            attn_mask = None
        kv_win = window_partition_jax(kv5, ws).reshape(-1, N, 2 * C)
        q_w = window_partition_jax(q5, ws).reshape(-1, N, C)
        k_w = kv_win[:, :, :C]
        v_w = kv_win[:, :, C:]
    else:
        # Faithful padded path: norm1 -> pad(0) -> window -> kv (so padded
        # tokens get kv(0) = bias exactly like torch).
        skip_n = layernorm_rows(skip2d, params["norm1_g"],
                                params["norm1_b"]).reshape(B, S, H, W, C)
        xup_n = layernorm_rows(xup2d, params["norm1_g"],
                               params["norm1_b"]).reshape(B, S, H, W, C)
        pads = ((0, 0), (0, pad_g), (0, pad_b), (0, pad_r), (0, 0))
        skip_n = jnp.pad(skip_n, pads)
        xup_n = jnp.pad(xup_n, pads)
        _, Sp, Hp, Wp, _ = skip_n.shape
        if shift_size > 0:
            skip_n = jnp.roll(skip_n, shift=(-shift_size,) * 3, axis=(1, 2, 3))
            xup_n = jnp.roll(xup_n, shift=(-shift_size,) * 3, axis=(1, 2, 3))
            attn_mask = mask_matrix
        else:
            attn_mask = None
        skip_w = window_partition_jax(skip_n, ws).reshape(-1, N, C)
        q_w = window_partition_jax(xup_n, ws).reshape(-1, N, C)
        nW_total = skip_w.shape[0]
        kv = linear_rows(skip_w.reshape(nW_total * N, C),
                         params["kv_w"], params["kv_b"]).reshape(nW_total, N, 2 * C)
        k_w = kv[:, :, :C]
        v_w = kv[:, :, C:]

    # relative position bias (num_heads, N, N) — passed once, never tiled
    rel_idx = compute_relative_position_index(ws)
    rel_bias = params["rel_table"][rel_idx.reshape(-1)].reshape(N, N, num_heads)
    rel_bias = jnp.transpose(rel_bias, (2, 0, 1))

    attn_w = window_attention_proj(q_w, k_w, v_w, rel_bias, attn_mask,
                                   params["proj_w"], params["proj_b"], scale)

    attn5 = attn_w.reshape(-1, ws, ws, ws, C)
    shifted = window_reverse_jax(attn5, ws, Sp, Hp, Wp)
    if shift_size > 0:
        shifted = jnp.roll(shifted, shift=(shift_size,) * 3, axis=(1, 2, 3))
    attn_flat = shifted[:, :S, :H, :W, :].reshape(B * L, C)

    # fused: (shortcut + attn) + MLP(norm2(shortcut + attn))
    out2d = res_ln_mlp_rows(attn_flat, shortcut2d,
                            params["norm2_g"], params["norm2_b"],
                            params["fc1_w"], params["fc1_b"],
                            params["fc2_w"], params["fc2_b"])
    return out2d.reshape(B, L, C)


# --------------------------------- main ---------------------------------

if __name__ == "__main__":
    B = 2
    S = H = W = 4
    C = 32
    num_heads = 4
    window_size = 2
    mlp_ratio = 4.0
    L = S * H * W
    hidden = int(C * mlp_ratio)
    N = window_size ** 3
    num_rel = (2 * window_size - 1) ** 3
    nW_per_img = (S // window_size) * (H // window_size) * (W // window_size)

    key = jax.random.PRNGKey(0)
    ks = jax.random.split(key, 16)

    params = {
        "norm1_g": jnp.ones((C,), jnp.float32),
        "norm1_b": jnp.zeros((C,), jnp.float32),
        "norm2_g": jnp.ones((C,), jnp.float32),
        "norm2_b": jnp.zeros((C,), jnp.float32),
        "kv_w": 0.02 * jax.random.normal(ks[0], (C, 2 * C), jnp.float32),
        "kv_b": 0.02 * jax.random.normal(ks[1], (2 * C,), jnp.float32),
        "proj_w": 0.02 * jax.random.normal(ks[2], (C, C), jnp.float32),
        "proj_b": 0.02 * jax.random.normal(ks[3], (C,), jnp.float32),
        "rel_table": 0.02 * jax.random.normal(ks[4], (num_rel, num_heads), jnp.float32),
        "fc1_w": 0.02 * jax.random.normal(ks[5], (C, hidden), jnp.float32),
        "fc1_b": 0.02 * jax.random.normal(ks[6], (hidden,), jnp.float32),
        "fc2_w": 0.02 * jax.random.normal(ks[7], (hidden, C), jnp.float32),
        "fc2_b": 0.02 * jax.random.normal(ks[8], (C,), jnp.float32),
    }

    x = jax.random.normal(ks[9], (B, L, C), jnp.float32)
    skip = jax.random.normal(ks[10], (B, L, C), jnp.float32)
    x_up = jax.random.normal(ks[11], (B, L, C), jnp.float32)
    # externally supplied shift mask (as in the torch driver); zeros here
    mask_matrix = jnp.zeros((nW_per_img, N, N), jnp.float32)

    # non-shifted block (mask unused)
    out0 = swin_block_kv_forward(
        params, x, mask_matrix, skip, x_up,
        input_resolution=(S, H, W), num_heads=num_heads,
        window_size=window_size, shift_size=0)

    # shifted block (exercises roll + per-window mask path)
    out1 = swin_block_kv_forward(
        params, x, mask_matrix, skip, x_up,
        input_resolution=(S, H, W), num_heads=num_heads,
        window_size=window_size, shift_size=1)

    jax.block_until_ready((out0, out1))
    assert out0.shape == (B, L, C) and out1.shape == (B, L, C)
    assert bool(jnp.all(jnp.isfinite(out0))) and bool(jnp.all(jnp.isfinite(out1)))
    print("KERNEL_OK")
</pallas_src>

<mosaic_0001>
module attributes {stable_mosaic.version = 11 : i64} {
  func.func @_ln_linear_kernel(%arg0: i32, %arg1: memref<128x32xf32, #tpu.memory_space<vmem>>, %arg2: memref<1x32xf32, #tpu.memory_space<vmem>>, %arg3: memref<1x32xf32, #tpu.memory_space<vmem>>, %arg4: memref<32x64xf32, #tpu.memory_space<vmem>>, %arg5: memref<1x64xf32, #tpu.memory_space<vmem>>, %arg6: memref<128x64xf32, #tpu.memory_space<vmem>>) attributes {dimension_semantics = [#tpu.dimension_semantics<parallel>], iteration_bounds = array<i64: 1>, scalar_prefetch = 0 : i64, scratch_operands = 0 : i64, tpu.core_type = #tpu.core_type<tc>, window_params = [{transform_indices = @transform_0, window_bounds = array<i64: 128, 32>}, {pipeline_mode = #tpu.pipeline_mode<synchronous>, transform_indices = @transform_1, window_bounds = array<i64: 1, 32>}, {pipeline_mode = #tpu.pipeline_mode<synchronous>, transform_indices = @transform_2, window_bounds = array<i64: 1, 32>}, {pipeline_mode = #tpu.pipeline_mode<synchronous>, transform_indices = @transform_3, window_bounds = array<i64: 32, 64>}, {pipeline_mode = #tpu.pipeline_mode<synchronous>, transform_indices = @transform_4, window_bounds = array<i64: 1, 64>}, {transform_indices = @transform_5, window_bounds = array<i64: 128, 64>}]} {
    %c0 = arith.constant 0 : index
    %c0_0 = arith.constant 0 : index
    %0 = vector.load %arg1[%c0, %c0_0] : memref<128x32xf32, #tpu.memory_space<vmem>>, vector<128x32xf32>
    %cst = arith.constant dense<0.000000e+00> : vector<128xf32>
    %1 = vector.multi_reduction <add>, %0, %cst [1] : vector<128x32xf32> to vector<128xf32>
    %2 = vector.shape_cast %1 : vector<128xf32> to vector<128x1xf32>
    %cst_1 = arith.constant 3.200000e+01 : f32
    %3 = vector.broadcast %cst_1 : f32 to vector<128x1xf32>
    %4 = arith.divf %2, %3 : vector<128x1xf32>
    %5 = vector.broadcast %4 : vector<128x1xf32> to vector<128x32xf32>
    %6 = arith.subf %0, %5 : vector<128x32xf32>
    %7 = arith.mulf %6, %6 : vector<128x32xf32>
    %cst_2 = arith.constant dense<0.000000e+00> : vector<128xf32>
    %8 = vector.multi_reduction <add>, %7, %cst_2 [1] : vector<128x32xf32> to vector<128xf32>
    %9 = vector.shape_cast %8 : vector<128xf32> to vector<128x1xf32>
    %cst_3 = arith.constant 3.200000e+01 : f32
    %10 = vector.broadcast %cst_3 : f32 to vector<128x1xf32>
    %11 = arith.divf %9, %10 : vector<128x1xf32>
    %12 = vector.broadcast %4 : vector<128x1xf32> to vector<128x32xf32>
    %13 = arith.subf %0, %12 : vector<128x32xf32>
    %cst_4 = arith.constant 9.99999974E-6 : f32
    %14 = vector.broadcast %cst_4 : f32 to vector<128x1xf32>
    %15 = arith.addf %11, %14 : vector<128x1xf32>
    %16 = math.rsqrt %15 : vector<128x1xf32>
    %17 = vector.broadcast %16 : vector<128x1xf32> to vector<128x32xf32>
    %18 = arith.mulf %13, %17 : vector<128x32xf32>
    %c0_5 = arith.constant 0 : index
    %c0_6 = arith.constant 0 : index
    %19 = vector.load %arg2[%c0_5, %c0_6] : memref<1x32xf32, #tpu.memory_space<vmem>>, vector<1x32xf32>
    %20 = vector.broadcast %19 : vector<1x32xf32> to vector<128x32xf32>
    %21 = arith.mulf %18, %20 : vector<128x32xf32>
    %c0_7 = arith.constant 0 : index
    %c0_8 = arith.constant 0 : index
    %22 = vector.load %arg3[%c0_7, %c0_8] : memref<1x32xf32, #tpu.memory_space<vmem>>, vector<1x32xf32>
    %23 = vector.broadcast %22 : vector<1x32xf32> to vector<128x32xf32>
    %24 = arith.addf %21, %23 : vector<128x32xf32>
    %c0_9 = arith.constant 0 : index
    %c0_10 = arith.constant 0 : index
    %25 = vector.load %arg4[%c0_9, %c0_10] : memref<32x64xf32, #tpu.memory_space<vmem>>, vector<32x64xf32>
    %cst_11 = arith.constant dense<0.000000e+00> : vector<128x64xf32>
    %26 = tpu.matmul %24, %25, %cst_11 {dimension_numbers = #tpu.dot_dimension_numbers<[1], [0], [0], [1], [0, 0, 1, 1], [], []>} : vector<128x32xf32>, vector<32x64xf32>, vector<128x64xf32> -> vector<128x64xf32>
    %c0_12 = arith.constant 0 : index
    %c0_13 = arith.constant 0 : index
    %27 = vector.load %arg5[%c0_12, %c0_13] : memref<1x64xf32, #tpu.memory_space<vmem>>, vector<1x64xf32>
    %28 = vector.broadcast %27 : vector<1x64xf32> to vector<128x64xf32>
    %29 = arith.addf %26, %28 : vector<128x64xf32>
    %c0_14 = arith.constant 0 : index
    %c0_15 = arith.constant 0 : index
    %30 = vector.load %arg6[%c0_14, %c0_15] : memref<128x64xf32, #tpu.memory_space<vmem>>, vector<128x64xf32>
    tpu.vector_store %arg6[%c0_14, %c0_15], %29 {strides = array<i32>} : memref<128x64xf32, #tpu.memory_space<vmem>>, vector<128x64xf32>,
    return
  }
  func.func @transform_0(%arg0: i32) -> (i32, i32) {
    %c0_i32 = arith.constant 0 : i32
    %c0_i32_0 = arith.constant 0 : i32
    return %arg0, %c0_i32 : i32, i32
  }
  func.func @transform_1(%arg0: i32) -> (i32, i32) {
    %c0_i32 = arith.constant 0 : i32
    %c0_i32_0 = arith.constant 0 : i32
    %c0_i32_1 = arith.constant 0 : i32
    return %c0_i32, %c0_i32_0 : i32, i32
  }
  func.func @transform_2(%arg0: i32) -> (i32, i32) {
    %c0_i32 = arith.constant 0 : i32
    %c0_i32_0 = arith.constant 0 : i32
    %c0_i32_1 = arith.constant 0 : i32
    return %c0_i32, %c0_i32_0 : i32, i32
  }
  func.func @transform_3(%arg0: i32) -> (i32, i32) {
    %c0_i32 = arith.constant 0 : i32
    %c0_i32_0 = arith.constant 0 : i32
    %c0_i32_1 = arith.constant 0 : i32
    return %c0_i32, %c0_i32_0 : i32, i32
  }
  func.func @transform_4(%arg0: i32) -> (i32, i32) {
    %c0_i32 = arith.constant 0 : i32
    %c0_i32_0 = arith.constant 0 : i32
    %c0_i32_1 = arith.constant 0 : i32
    return %c0_i32, %c0_i32_0 : i32, i32
  }
  func.func @transform_5(%arg0: i32) -> (i32, i32) {
    %c0_i32 = arith.constant 0 : i32
    %c0_i32_0 = arith.constant 0 : i32
    return %arg0, %c0_i32 : i32, i32
  }
}

</mosaic_0001>

<llo_original>
// kernel: tpu_custom_call.1
$region0: #{tpu_custom_call.1}
  #allocation0 [shape = 'u32[]', space=smem, size = 0x4, offset = 0x4, fixed_abs, tag = 'smem constant byte address 0x4 - core index']
  #allocation1 [shape = 'u32[144,128]{1,0:T(1,128)}', space=vmem, size = 0x12000, scoped, tag = 'internal scratch']
  %s0 = inlined_call_operand.vmem [shape: f32[128,32], index: 0, kind: input, shape index: {}]
  %s1 = inlined_call_operand.vmem [shape: f32[1,32], index: 1, kind: input, shape index: {}]
  %s2 = inlined_call_operand.vmem [shape: f32[1,32], index: 2, kind: input, shape index: {}]
  %s3 = inlined_call_operand.vmem [shape: f32[32,64], index: 3, kind: input, shape index: {}]
  %s4 = inlined_call_operand.vmem [shape: f32[1,64], index: 4, kind: input, shape index: {}]
  %s5 = inlined_call_operand.vmem [shape: f32[128,64], index: 5, kind: output, shape index: {}]
  %s6 = sld [smem:[#allocation0]]
  $region30: #{tpu_custom_call.1} parent=0
    _
  %s8 = ssub.s32 1, %s6
  %s9 = scalar_select 0, %s8, %s6
  // Predicated region
  $region2: #{tpu_custom_call.1} parent=0 // pred_check
    _
  $region3: #{tpu_custom_call.1} parent=0 // pred_check_branch
    %11 = sbr.rel (0) target = $region5
  $region4: #{tpu_custom_call.1} parent=0 // pred_region
    _
  $region5: #{tpu_custom_call.1} parent=0 // pred_fallthru
    _
  // Predicated region
  $region6: #{tpu_custom_call.1} parent=0 // pred_check
    _
  $region7: #{tpu_custom_call.1} parent=0 // pred_check_branch
    %13 = sbr.rel (0) target = $region9
  $region8: #{tpu_custom_call.1} parent=0 // pred_region
    _
  $region9: #{tpu_custom_call.1} parent=0 // pred_fallthru
    _
  // Predicated region
  $region10: #{tpu_custom_call.1} parent=0 // pred_check
    _
  $region11: #{tpu_custom_call.1} parent=0 // pred_check_branch
    %15 = sbr.rel (0) target = $region13
  $region12: #{tpu_custom_call.1} parent=0 // pred_region
    _
  $region13: #{tpu_custom_call.1} parent=0 // pred_fallthru
    _
  // Predicated region
  $region14: #{tpu_custom_call.1} parent=0 // pred_check
    _
  $region15: #{tpu_custom_call.1} parent=0 // pred_check_branch
    %17 = sbr.rel (0) target = $region17
  $region16: #{tpu_custom_call.1} parent=0 // pred_region
    _
  $region17: #{tpu_custom_call.1} parent=0 // pred_fallthru
    _
  // Predicated region
  $region18: #{tpu_custom_call.1} parent=0 // pred_check
    _
  $region19: #{tpu_custom_call.1} parent=0 // pred_check_branch
    %19 = sbr.rel (0) target = $region21
  $region20: #{tpu_custom_call.1} parent=0 // pred_region
    _
  $region21: #{tpu_custom_call.1} parent=0 // pred_fallthru
    _
  %v20 = vld [vmem:[%s0] sm:$0xff]
  %v21 = vld [vmem:[%s0 + $0x8] sm:$0xff]
  %v22 = vld [vmem:[%s0 + $0x10] sm:$0xff]
  %v23 = vld [vmem:[%s0 + $0x18] sm:$0xff]
  %v24 = vld [vmem:[%s0 + $0x20] sm:$0xff]
  %v25 = vld [vmem:[%s0 + $0x28] sm:$0xff]
  %v26 = vld [vmem:[%s0 + $0x30] sm:$0xff]
  %v27 = vld [vmem:[%s0 + $0x38] sm:$0xff]
  %v28 = vld [vmem:[%s0 + $0x40] sm:$0xff]
  %v29 = vld [vmem:[%s0 + $0x48] sm:$0xff]
  %v30 = vld [vmem:[%s0 + $0x50] sm:$0xff]
  %v31 = vld [vmem:[%s0 + $0x58] sm:$0xff]
  %v32 = vld [vmem:[%s0 + $0x60] sm:$0xff]
  %v33 = vld [vmem:[%s0 + $0x68] sm:$0xff]
  %v34 = vld [vmem:[%s0 + $0x70] sm:$0xff]
  %v35 = vld [vmem:[%s0 + $0x78] sm:$0xff]
  %vm36 = vcmask 261120
  %v37 = vsel %vm36, %v20, 0.0
  %38 = vadd.xlane.f32.xlu0 %v37
  %v39 = vpop.xlane.xlu0 %38
  %v40 = vsel %vm36, %v21, 0.0
  %41 = vadd.xlane.f32.xlu0 %v40
  %v42 = vpop.xlane.xlu0 %41
  %v43 = vsel %vm36, %v22, 0.0
  %44 = vadd.xlane.f32.xlu0 %v43
  %v45 = vpop.xlane.xlu0 %44
  %v46 = vsel %vm36, %v23, 0.0
  %47 = vadd.xlane.f32.xlu0 %v46
  %v48 = vpop.xlane.xlu0 %47
  %v49 = vsel %vm36, %v24, 0.0
  %50 = vadd.xlane.f32.xlu0 %v49
  %v51 = vpop.xlane.xlu0 %50
  %v52 = vsel %vm36, %v25, 0.0
  %53 = vadd.xlane.f32.xlu0 %v52
  %v54 = vpop.xlane.xlu0 %53
  %v55 = vsel %vm36, %v26, 0.0
  %56 = vadd.xlane.f32.xlu0 %v55
  %v57 = vpop.xlane.xlu0 %56
  %v58 = vsel %vm36, %v27, 0.0
  %59 = vadd.xlane.f32.xlu0 %v58
  %v60 = vpop.xlane.xlu0 %59
  %v61 = vsel %vm36, %v28, 0.0
  %62 = vadd.xlane.f32.xlu0 %v61
  %v63 = vpop.xlane.xlu0 %62
  %v64 = vsel %vm36, %v29, 0.0
  %65 = vadd.xlane.f32.xlu0 %v64
  %v66 = vpop.xlane.xlu0 %65
  %v67 = vsel %vm36, %v30, 0.0
  %68 = vadd.xlane.f32.xlu0 %v67
  %v69 = vpop.xlane.xlu0 %68
  %v70 = vsel %vm36, %v31, 0.0
  %71 = vadd.xlane.f32.xlu0 %v70
  %v72 = vpop.xlane.xlu0 %71
  %v73 = vsel %vm36, %v32, 0.0
  %74 = vadd.xlane.f32.xlu0 %v73
  %v75 = vpop.xlane.xlu0 %74
  %v76 = vsel %vm36, %v33, 0.0
  %77 = vadd.xlane.f32.xlu0 %v76
  %v78 = vpop.xlane.xlu0 %77
  %v79 = vsel %vm36, %v34, 0.0
  %80 = vadd.xlane.f32.xlu0 %v79
  %v81 = vpop.xlane.xlu0 %80
  %v82 = vsel %vm36, %v35, 0.0
  %83 = vadd.xlane.f32.xlu0 %v82
  %v84 = vpop.xlane.xlu0 %83
  %v85 = vrcp.pop 32.0
  %v86 = vmul.f32 %v39, %v85
  %v87 = vmul.f32 %v42, %v85
  %v88 = vmul.f32 %v45, %v85
  %v89 = vmul.f32 %v48, %v85
  %v90 = vmul.f32 %v51, %v85
  %v91 = vmul.f32 %v54, %v85
  %v92 = vmul.f32 %v57, %v85
  %v93 = vmul.f32 %v60, %v85
  %v94 = vmul.f32 %v63, %v85
  %v95 = vmul.f32 %v66, %v85
  %v96 = vmul.f32 %v69, %v85
  %v97 = vmul.f32 %v72, %v85
  %v98 = vmul.f32 %v75, %v85
  %v99 = vmul.f32 %v78, %v85
  %v100 = vmul.f32 %v81, %v85
  %v101 = vmul.f32 %v84, %v85
  %v102 = vsub.f32 %v20, %v86
  %v103 = vsub.f32 %v21, %v87
  %v104 = vsub.f32 %v22, %v88
  %v105 = vsub.f32 %v23, %v89
  %v106 = vsub.f32 %v24, %v90
  %v107 = vsub.f32 %v25, %v91
  %v108 = vsub.f32 %v26, %v92
  %v109 = vsub.f32 %v27, %v93
  %v110 = vsub.f32 %v28, %v94
  %v111 = vsub.f32 %v29, %v95
  %v112 = vsub.f32 %v30, %v96
  %v113 = vsub.f32 %v31, %v97
  %v114 = vsub.f32 %v32, %v98
  %v115 = vsub.f32 %v33, %v99
  %v116 = vsub.f32 %v34, %v100
  %v117 = vsub.f32 %v35, %v101
  %v118 = vmul.f32 %v102, %v102
  %v119 = vmul.f32 %v103, %v103
  %v120 = vmul.f32 %v104, %v104
  %v121 = vmul.f32 %v105, %v105
  %v122 = vmul.f32 %v106, %v106
  %v123 = vmul.f32 %v107, %v107
  %v124 = vmul.f32 %v108, %v108
  %v125 = vmul.f32 %v109, %v109
  %v126 = vmul.f32 %v110, %v110
  %v127 = vmul.f32 %v111, %v111
  %v128 = vmul.f32 %v112, %v112
  %v129 = vmul.f32 %v113, %v113
  %v130 = vmul.f32 %v114, %v114
  %v131 = vmul.f32 %v115, %v115
  %v132 = vmul.f32 %v116, %v116
  %v133 = vmul.f32 %v117, %v117
  %v134 = vsel %vm36, %v118, 0.0
  %135 = vadd.xlane.f32.xlu0 %v134
  %v136 = vpop.xlane.xlu0 %135
  %v137 = vsel %vm36, %v119, 0.0
  %138 = vadd.xlane.f32.xlu0 %v137
  %v139 = vpop.xlane.xlu0 %138
  %v140 = vsel %vm36, %v120, 0.0
  %141 = vadd.xlane.f32.xlu0 %v140
  %v142 = vpop.xlane.xlu0 %141
  %v143 = vsel %vm36, %v121, 0.0
  %144 = vadd.xlane.f32.xlu0 %v143
  %v145 = vpop.xlane.xlu0 %144
  %v146 = vsel %vm36, %v122, 0.0
  %147 = vadd.xlane.f32.xlu0 %v146
  %v148 = vpop.xlane.xlu0 %147
  %v149 = vsel %vm36, %v123, 0.0
  %150 = vadd.xlane.f32.xlu0 %v149
  %v151 = vpop.xlane.xlu0 %150
  %v152 = vsel %vm36, %v124, 0.0
  %153 = vadd.xlane.f32.xlu0 %v152
  %v154 = vpop.xlane.xlu0 %153
  %v155 = vsel %vm36, %v125, 0.0
  %156 = vadd.xlane.f32.xlu0 %v155
  %v157 = vpop.xlane.xlu0 %156
  %v158 = vsel %vm36, %v126, 0.0
  %159 = vadd.xlane.f32.xlu0 %v158
  %v160 = vpop.xlane.xlu0 %159
  %v161 = vsel %vm36, %v127, 0.0
  %162 = vadd.xlane.f32.xlu0 %v161
  %v163 = vpop.xlane.xlu0 %162
  %v164 = vsel %vm36, %v128, 0.0
  %165 = vadd.xlane.f32.xlu0 %v164
  %v166 = vpop.xlane.xlu0 %165
  %v167 = vsel %vm36, %v129, 0.0
  %168 = vadd.xlane.f32.xlu0 %v167
  %v169 = vpop.xlane.xlu0 %168
  %v170 = vsel %vm36, %v130, 0.0
  %171 = vadd.xlane.f32.xlu0 %v170
  %v172 = vpop.xlane.xlu0 %171
  %v173 = vsel %vm36, %v131, 0.0
  %174 = vadd.xlane.f32.xlu0 %v173
  %v175 = vpop.xlane.xlu0 %174
  %v176 = vsel %vm36, %v132, 0.0
  %177 = vadd.xlane.f32.xlu0 %v176
  %v178 = vpop.xlane.xlu0 %177
  %v179 = vsel %vm36, %v133, 0.0
  %180 = vadd.xlane.f32.xlu0 %v179
  %v181 = vpop.xlane.xlu0 %180
  %v182 = vmul.f32 %v136, %v85
  %v183 = vmul.f32 %v139, %v85
  %v184 = vmul.f32 %v142, %v85
  %v185 = vmul.f32 %v145, %v85
  %v186 = vmul.f32 %v148, %v85
  %v187 = vmul.f32 %v151, %v85
  %v188 = vmul.f32 %v154, %v85
  %v189 = vmul.f32 %v157, %v85
  %v190 = vmul.f32 %v160, %v85
  %v191 = vmul.f32 %v163, %v85
  %v192 = vmul.f32 %v166, %v85
  %v193 = vmul.f32 %v169, %v85
  %v194 = vmul.f32 %v172, %v85
  %v195 = vmul.f32 %v175, %v85
  %v196 = vmul.f32 %v178, %v85
  %v197 = vmul.f32 %v181, %v85
  %v198 = vadd.f32 %v182, 1e-05
  %v199 = vadd.f32 %v183, 1e-05
  %v200 = vadd.f32 %v184, 1e-05
  %v201 = vadd.f32 %v185, 1e-05
  %v202 = vadd.f32 %v186, 1e-05
  %v203 = vadd.f32 %v187, 1e-05
  %v204 = vadd.f32 %v188, 1e-05
  %v205 = vadd.f32 %v189, 1e-05
  %v206 = vadd.f32 %v190, 1e-05
  %v207 = vadd.f32 %v191, 1e-05
  %v208 = vadd.f32 %v192, 1e-05
  %v209 = vadd.f32 %v193, 1e-05
  %v210 = vadd.f32 %v194, 1e-05
  %v211 = vadd.f32 %v195, 1e-05
  %v212 = vadd.f32 %v196, 1e-05
  %v213 = vadd.f32 %v197, 1e-05
  %v214 = vrsqrt.pop %v198
  %v215 = vrsqrt.pop %v199
  %v216 = vrsqrt.pop %v200
  %v217 = vrsqrt.pop %v201
  %v218 = vrsqrt.pop %v202
  %v219 = vrsqrt.pop %v203
  %v220 = vrsqrt.pop %v204
  %v221 = vrsqrt.pop %v205
  %v222 = vrsqrt.pop %v206
  %v223 = vrsqrt.pop %v207
  %v224 = vrsqrt.pop %v208
  %v225 = vrsqrt.pop %v209
  %v226 = vrsqrt.pop %v210
  %v227 = vrsqrt.pop %v211
  %v228 = vrsqrt.pop %v212
  %v229 = vrsqrt.pop %v213
  %v230 = vmul.f32 %v102, %v214
  %v231 = vmul.f32 %v103, %v215
  %v232 = vmul.f32 %v104, %v216
  %v233 = vmul.f32 %v105, %v217
  %v234 = vmul.f32 %v106, %v218
  %v235 = vmul.f32 %v107, %v219
  %v236 = vmul.f32 %v108, %v220
  %v237 = vmul.f32 %v109, %v221
  %v238 = vmul.f32 %v110, %v222
  %v239 = vmul.f32 %v111, %v223
  %v240 = vmul.f32 %v112, %v224
  %v241 = vmul.f32 %v113, %v225
  %v242 = vmul.f32 %v114, %v226
  %v243 = vmul.f32 %v115, %v227
  %v244 = vmul.f32 %v116, %v228
  %v245 = vmul.f32 %v117, %v229
  %v246 = vld [vmem:[%s1] sm:$0x1]
  %v248 = vlaneseq
  %v249 = vshrl.u32 %v248, 7
  %v250 = vsub.s32 0, %v249
  %v251 = vrot.slane %v246, %v250
  %v253 = vmul.f32 %v230, %v251
  %v254 = vmul.f32 %v231, %v251
  %v255 = vmul.f32 %v232, %v251
  %v256 = vmul.f32 %v233, %v251
  %v257 = vmul.f32 %v234, %v251
  %v258 = vmul.f32 %v235, %v251
  %v259 = vmul.f32 %v236, %v251
  %v260 = vmul.f32 %v237, %v251
  %v261 = vmul.f32 %v238, %v251
  %v262 = vmul.f32 %v239, %v251
  %v263 = vmul.f32 %v240, %v251
  %v264 = vmul.f32 %v241, %v251
  %v265 = vmul.f32 %v242, %v251
  %v266 = vmul.f32 %v243, %v251
  %v267 = vmul.f32 %v244, %v251
  %v268 = vmul.f32 %v245, %v251
  %v269 = vld [vmem:[%s2] sm:$0x1]
  %v271 = vlaneseq
  %v272 = vshrl.u32 %v271, 7
  %v273 = vsub.s32 0, %v272
  %v274 = vrot.slane %v269, %v273
  %v276 = vadd.f32 %v253, %v274
  %v277 = vadd.f32 %v254, %v274
  %v278 = vadd.f32 %v255, %v274
  %v279 = vadd.f32 %v256, %v274
  %v280 = vadd.f32 %v257, %v274
  %v281 = vadd.f32 %v258, %v274
  %v282 = vadd.f32 %v259, %v274
  %v283 = vadd.f32 %v260, %v274
  %v284 = vadd.f32 %v261, %v274
  %v285 = vadd.f32 %v262, %v274
  %v286 = vadd.f32 %v263, %v274
  %v287 = vadd.f32 %v264, %v274
  %v288 = vadd.f32 %v265, %v274
  %v289 = vadd.f32 %v266, %v274
  %v290 = vadd.f32 %v267, %v274
  %v291 = vadd.f32 %v268, %v274
  %v292 = vld [vmem:[%s3] sm:$0xff]
  %v293 = vld [vmem:[%s3 + $0x8] sm:$0xff]
  %v294 = vld [vmem:[%s3 + $0x10] sm:$0xff]
  %v295 = vld [vmem:[%s3 + $0x18] sm:$0xff]
  %v296 = vld [vmem:[%s4] sm:$0x1]
  %v298 = vlaneseq
  %v299 = vshrl.u32 %v298, 7
  %v300 = vsub.s32 0, %v299
  %v301 = vrot.slane %v296, %v300
  %v304 = vsel %vm36, %v276, 0
  %v307 = vsel %vm36, %v277, 0
  %v310 = vsel %vm36, %v278, 0
  %v313 = vsel %vm36, %v279, 0
  %v316 = vsel %vm36, %v280, 0
  %v319 = vsel %vm36, %v281, 0
  %v322 = vsel %vm36, %v282, 0
  %v325 = vsel %vm36, %v283, 0
  %v328 = vsel %vm36, %v284, 0
  %v331 = vsel %vm36, %v285, 0
  %v334 = vsel %vm36, %v286, 0
  %v337 = vsel %vm36, %v287, 0
  %v340 = vsel %vm36, %v288, 0
  %v343 = vsel %vm36, %v289, 0
  %v346 = vsel %vm36, %v290, 0
  %v349 = vsel %vm36, %v291, 0
  %351 = vmatprep.subr.mxu0 0.0
  %352 = vmatpush1.msra.mxu0 0.0
  %353 = vmatprep.subr.mxu0 0.0
  %354 = vmatpush1.msra.mxu0 0.0
  %355 = vmatprep.subr.mxu0 0.0
  %356 = vmatpush1.msra.mxu0 0.0
  %357 = vmatprep.subr.mxu0 0.0
  %358 = vmatpush1.msra.mxu0 0.0
  %359 = vmatprep.subr.mxu0 0.0
  %360 = vmatpush1.msra.mxu0 0.0
  %361 = vmatprep.subr.mxu0 0.0
  %362 = vmatpush1.msra.mxu0 0.0
  %363 = vmatprep.subr.mxu0 0.0
  %364 = vmatpush1.msra.mxu0 0.0
  %365 = vmatprep.subr.mxu0 0.0
  %366 = vmatpush1.msra.mxu0 0.0
  %367 = vmatprep.subr.mxu0 0.0
  %368 = vmatpush1.msra.mxu0 0.0
  %369 = vmatprep.subr.mxu0 0.0
  %370 = vmatpush1.msra.mxu0 0.0
  %371 = vmatprep.subr.mxu0 0.0
  %372 = vmatpush1.msra.mxu0 0.0
  %373 = vmatprep.subr.mxu0 0.0
  %374 = vmatpush1.msra.mxu0 0.0
  %375 = vmatprep.subr.mxu0 0.0
  %376 = vmatpush1.msra.mxu0 %v295
  %377 = vmatprep.subr.mxu0 0.0
  %378 = vmatpush1.msra.mxu0 %v294
  %379 = vmatprep.subr.mxu0 0.0
  %380 = vmatpush1.msra.mxu0 %v293
  %381 = vmatprep.subr.mxu0 0.0
  %382 = vmatpush1.msra.mxu0 %v292
  %383 = vmatprep.subr.mxu0 0.0
  %384 = vmatpush2.msra.mxu0 0.0
  %385 = vmatprep.subr.mxu0 0.0
  %386 = vmatpush2.msra.mxu0 0.0
  %387 = vmatprep.subr.mxu0 0.0
  %388 = vmatpush2.msra.mxu0 0.0
  %389 = vmatprep.subr.mxu0 0.0
  %390 = vmatpush2.msra.mxu0 0.0
  %391 = vmatprep.subr.mxu0 0.0
  %392 = vmatpush2.msra.mxu0 0.0
  %393 = vmatprep.subr.mxu0 0.0
  %394 = vmatpush2.msra.mxu0 0.0
  %395 = vmatprep.subr.mxu0 0.0
  %396 = vmatpush2.msra.mxu0 0.0
  %397 = vmatprep.subr.mxu0 0.0
  %398 = vmatpush2.msra.mxu0 0.0
  %399 = vmatprep.subr.mxu0 0.0
  %400 = vmatpush2.msra.mxu0 0.0
  %401 = vmatprep.subr.mxu0 0.0
  %402 = vmatpush2.msra.mxu0 0.0
  %403 = vmatprep.subr.mxu0 0.0
  %404 = vmatpush2.msra.mxu0 0.0
  %405 = vmatprep.subr.mxu0 0.0
  %406 = vmatpush2.msra.mxu0 0.0
  %407 = vmatprep.subr.mxu0 0.0
  %408 = vmatpush2.msra.mxu0 0.0
  %409 = vmatprep.subr.mxu0 0.0
  %410 = vmatpush2.msra.mxu0 0.0
  %411 = vmatprep.subr.mxu0 0.0
  %412 = vmatpush2.msra.mxu0 0.0
  %413 = vmatprep.subr.mxu0 0.0
  %414 = vmatpush2.msra.mxu0 0.0
  %415 = vmatprep.mubr.f32.mxu0 0.0
  %416 = vmatmul.mubr.f32.gmra.mxu0 %v304
  %v417 = vpop.f32.mrf.mxu0
  %v418 = vadd.f32 %v301, %v417
  %v419 = vpop.f32.mrf.mxu0
  %420 = vmatprep.mubr.f32.mxu0 0.0
  %421 = vmatmul.mubr.f32.gmra.mxu0 %v307
  %v422 = vpop.f32.mrf.mxu0
  %v423 = vadd.f32 %v301, %v422
  %v424 = vpop.f32.mrf.mxu0
  %425 = vmatprep.mubr.f32.mxu0 0.0
  %426 = vmatmul.mubr.f32.gmra.mxu0 %v310
  %v427 = vpop.f32.mrf.mxu0
  %v428 = vadd.f32 %v301, %v427
  %v429 = vpop.f32.mrf.mxu0
  %430 = vmatprep.mubr.f32.mxu0 0.0
  %431 = vmatmul.mubr.f32.gmra.mxu0 %v313
  %v432 = vpop.f32.mrf.mxu0
  %v433 = vadd.f32 %v301, %v432
  %v434 = vpop.f32.mrf.mxu0
  %435 = vmatprep.mubr.f32.mxu0 0.0
  %436 = vmatmul.mubr.f32.gmra.mxu0 %v316
  %v437 = vpop.f32.mrf.mxu0
  %v438 = vadd.f32 %v301, %v437
  %v439 = vpop.f32.mrf.mxu0
  %440 = vmatprep.mubr.f32.mxu0 0.0
  %441 = vmatmul.mubr.f32.gmra.mxu0 %v319
  %v442 = vpop.f32.mrf.mxu0
  %v443 = vadd.f32 %v301, %v442
  %v444 = vpop.f32.mrf.mxu0
  %445 = vmatprep.mubr.f32.mxu0 0.0
  %446 = vmatmul.mubr.f32.gmra.mxu0 %v322
  %v447 = vpop.f32.mrf.mxu0
  %v448 = vadd.f32 %v301, %v447
  %v449 = vpop.f32.mrf.mxu0
  %450 = vmatprep.mubr.f32.mxu0 0.0
  %451 = vmatmul.mubr.f32.gmra.mxu0 %v325
  %v452 = vpop.f32.mrf.mxu0
  %v453 = vadd.f32 %v301, %v452
  %v454 = vpop.f32.mrf.mxu0
  %455 = vmatprep.mubr.f32.mxu0 0.0
  %456 = vmatmul.mubr.f32.gmra.mxu0 %v328
  %v457 = vpop.f32.mrf.mxu0
  %v458 = vadd.f32 %v301, %v457
  %v459 = vpop.f32.mrf.mxu0
  %460 = vmatprep.mubr.f32.mxu0 0.0
  %461 = vmatmul.mubr.f32.gmra.mxu0 %v331
  %v462 = vpop.f32.mrf.mxu0
  %v463 = vadd.f32 %v301, %v462
  %v464 = vpop.f32.mrf.mxu0
  %465 = vmatprep.mubr.f32.mxu0 0.0
  %466 = vmatmul.mubr.f32.gmra.mxu0 %v334
  %v467 = vpop.f32.mrf.mxu0
  %v468 = vadd.f32 %v301, %v467
  %v469 = vpop.f32.mrf.mxu0
  %470 = vmatprep.mubr.f32.mxu0 0.0
  %471 = vmatmul.mubr.f32.gmra.mxu0 %v337
  %v472 = vpop.f32.mrf.mxu0
  %v473 = vadd.f32 %v301, %v472
  %v474 = vpop.f32.mrf.mxu0
  %475 = vmatprep.mubr.f32.mxu0 0.0
  %476 = vmatmul.mubr.f32.gmra.mxu0 %v340
  %v477 = vpop.f32.mrf.mxu0
  %v478 = vadd.f32 %v301, %v477
  %v479 = vpop.f32.mrf.mxu0
  %480 = vmatprep.mubr.f32.mxu0 0.0
  %481 = vmatmul.mubr.f32.gmra.mxu0 %v343
  %v482 = vpop.f32.mrf.mxu0
  %v483 = vadd.f32 %v301, %v482
  %v484 = vpop.f32.mrf.mxu0
  %485 = vmatprep.mubr.f32.mxu0 0.0
  %486 = vmatmul.mubr.f32.gmra.mxu0 %v346
  %v487 = vpop.f32.mrf.mxu0
  %v488 = vadd.f32 %v301, %v487
  %v489 = vpop.f32.mrf.mxu0
  %490 = vmatprep.mubr.f32.mxu0 0.0
  %491 = vmatmul.mubr.f32.gmra.mxu0 %v349
  %v492 = vpop.f32.mrf.mxu0
  %v493 = vadd.f32 %v301, %v492
  %v494 = vpop.f32.mrf.mxu0
  %495 = vdwg.mxu0
  %vm496 = vcmask 523264
  %497 = vst.msk [vmem:[%s5] sm:$0xff] %vm496, %v418
  %498 = vst.msk [vmem:[%s5 + $0x8] sm:$0xff] %vm496, %v423
  %499 = vst.msk [vmem:[%s5 + $0x10] sm:$0xff] %vm496, %v428
  %500 = vst.msk [vmem:[%s5 + $0x18] sm:$0xff] %vm496, %v433
  %501 = vst.msk [vmem:[%s5 + $0x20] sm:$0xff] %vm496, %v438
  %502 = vst.msk [vmem:[%s5 + $0x28] sm:$0xff] %vm496, %v443
  %503 = vst.msk [vmem:[%s5 + $0x30] sm:$0xff] %vm496, %v448
  %504 = vst.msk [vmem:[%s5 + $0x38] sm:$0xff] %vm496, %v453
  %505 = vst.msk [vmem:[%s5 + $0x40] sm:$0xff] %vm496, %v458
  %506 = vst.msk [vmem:[%s5 + $0x48] sm:$0xff] %vm496, %v463
  %507 = vst.msk [vmem:[%s5 + $0x50] sm:$0xff] %vm496, %v468
  %508 = vst.msk [vmem:[%s5 + $0x58] sm:$0xff] %vm496, %v473
  %509 = vst.msk [vmem:[%s5 + $0x60] sm:$0xff] %vm496, %v478
  %510 = vst.msk [vmem:[%s5 + $0x68] sm:$0xff] %vm496, %v483
  %511 = vst.msk [vmem:[%s5 + $0x70] sm:$0xff] %vm496, %v488
  %512 = vst.msk [vmem:[%s5 + $0x78] sm:$0xff] %vm496, %v493
  // Predicated region
  $region22: #{tpu_custom_call.1} parent=0 // pred_check
    _
  $region23: #{tpu_custom_call.1} parent=0 // pred_check_branch
    %514 = sbr.rel (0) target = $region25
  $region24: #{tpu_custom_call.1} parent=0 // pred_region
    _
  $region25: #{tpu_custom_call.1} parent=0 // pred_fallthru
    _
  // Predicated region
  $region26: #{tpu_custom_call.1} parent=0 // pred_check
    _
  $region27: #{tpu_custom_call.1} parent=0 // pred_check_branch
    %516 = sbr.rel (0) target = $region29
  $region28: #{tpu_custom_call.1} parent=0 // pred_region
    _
  $region29: #{tpu_custom_call.1} parent=0 // pred_fallthru
    _

</llo_original>
